<compile_context>
chip_gen: v7x
topology: tpu7x:2x2x1
jax: 0.10.0
libtpu: 0.0.40
codegen_flags: <defaults>
</compile_context>

<pallas_src>
import functools

import jax
import jax.numpy as jnp
from jax.experimental import pallas as pl
from jax.experimental.pallas import tpu as pltpu


# ---------------------------------------------------------------------------
# Stage 1: separable block dilation of the zero-padded Bernoulli seed mask.
# ---------------------------------------------------------------------------
def _dilate_kernel(m2_ref, keep_ref, *, block_size, height, width):
    """keep[p, q] = 1 iff no seed drops (p, q).

    m2_ref : (tbc, H + bs - 1, W + bs - 1) int8, seed mask zero-padded by
             (bs - 1) on every spatial side.  A max over the [0, bs) window
             reproduces PyTorch's top-left-anchored scatter exactly.
    keep_ref: (tbc, H, W) int8 output (1 = keep, 0 = dropped).
    """
    m2 = m2_ref[...].astype(jnp.float32)

    # Separable max-pool: horizontal (lane axis) first, then vertical
    # (sublane axis): 2*bs passes instead of bs**2.
    h = m2[:, :, 0:width]
    for t in range(1, block_size):
        h = jnp.maximum(h, m2[:, :, t:t + width])
    d = h[:, 0:height, :]
    for s in range(1, block_size):
        d = jnp.maximum(d, h[:, s:s + height, :])

    keep_ref[...] = (d == 0.0).astype(jnp.int8)


# ---------------------------------------------------------------------------
# Stage 2: lane-dense fused elementwise pass  out = x * keep * scale.
# ---------------------------------------------------------------------------
def _apply_kernel(scale_ref, x_ref, keep_ref, o_ref):
    scale = scale_ref[0]                      # f32 scalar from SMEM
    o_ref[...] = jnp.where(keep_ref[...] != 0,
                           x_ref[...] * scale,
                           0.0).astype(o_ref.dtype)


def _lane_dense_view(n_elements):
    """Pick a (rows, lanes) factorization with a 128-multiple lane axis."""
    for lanes in (512, 1024, 256, 128):
        if n_elements % lanes == 0:
            return n_elements // lanes, lanes
    return None


def dropblock(x, gamma, *, block_size, key, training=True):
    """JAX/Pallas equivalent of DropBlock.forward(x, gamma). x is NCHW."""
    if not training:
        return x

    B, C, H, W = x.shape
    pad = block_size - 1
    hm, wm = H - pad, W - pad
    nbc = B * C

    # Bernoulli seeds, one per possible block anchor (same as PyTorch).
    seed = jax.random.bernoulli(key, gamma, (B, C, hm, wm)).astype(jnp.int8)
    m2 = jnp.pad(seed, ((0, 0), (0, 0), (pad, pad), (pad, pad)))
    m2 = m2.reshape(nbc, H + pad, W + pad)

    # ---- Stage 1: dilation, tiled over B*C (spatial dims whole). ----------
    bytes_per_plane = (H + pad) * (W + pad) + H * W        # int8 in + int8 out
    tbc = min(nbc, max(1, (1 << 20) // max(1, bytes_per_plane)))
    dil_kernel = functools.partial(_dilate_kernel, block_size=block_size,
                                   height=H, width=W)
    keep = pl.pallas_call(
        dil_kernel,
        out_shape=jax.ShapeDtypeStruct((nbc, H, W), jnp.int8),
        grid=(pl.cdiv(nbc, tbc),),
        in_specs=[pl.BlockSpec((tbc, H + pad, W + pad), lambda i: (i, 0, 0))],
        out_specs=pl.BlockSpec((tbc, H, W), lambda i: (i, 0, 0)),
        compiler_params=pltpu.CompilerParams(
            dimension_semantics=("parallel",)),
    )(m2)

    # ---- Global reduction hoisted out of the hot path (exact int32). ------
    count_ones = jnp.sum(keep, dtype=jnp.int32).astype(jnp.float32)
    count_m = jnp.float32(B * C * H * W)
    # NOTE: count_ones == 0 -> inf scale, same semantics as the PyTorch code.
    scale = (count_m / count_ones).reshape(1)

    # ---- Stage 2: lane-dense mask + normalize, tiled + pipelined. ---------
    n = B * C * H * W
    rl = _lane_dense_view(n)
    rows, lanes = rl if rl is not None else (nbc, H * W)
    x_flat = x.reshape(rows, lanes)
    keep_flat = keep.reshape(rows, lanes)

    itemsize = jnp.dtype(x.dtype).itemsize
    bytes_per_row = lanes * (2 * itemsize + 1)             # x + out + keep
    tr = min(rows, max(8, (3 * 1024 * 1024) // max(1, bytes_per_row)))
    if tr != rows:
        tr = max(8, (tr // 8) * 8)

    out_flat = pl.pallas_call(
        _apply_kernel,
        out_shape=jax.ShapeDtypeStruct((rows, lanes), x.dtype),
        grid=(pl.cdiv(rows, tr),),
        in_specs=[
            pl.BlockSpec(memory_space=pltpu.MemorySpace.SMEM),   # scale (1,)
            pl.BlockSpec((tr, lanes), lambda i: (i, 0)),         # x
            pl.BlockSpec((tr, lanes), lambda i: (i, 0)),         # keep (int8)
        ],
        out_specs=pl.BlockSpec((tr, lanes), lambda i: (i, 0)),
        compiler_params=pltpu.CompilerParams(
            dimension_semantics=("parallel",)),
    )(scale, x_flat, keep_flat)

    return out_flat.reshape(B, C, H, W)


# ---------------------------------------------------------------------------
# Pure-JAX reference mirroring the PyTorch module (same sampled mask).
# ---------------------------------------------------------------------------
def _dropblock_reference(x, seed_mask, block_size):
    B, C, H, W = x.shape
    pad = block_size - 1
    m2 = jnp.pad(seed_mask.astype(jnp.float32),
                 ((0, 0), (0, 0), (pad, pad), (pad, pad)))
    padded = jnp.zeros((B, C, H, W), jnp.float32)
    for s in range(block_size):
        for t in range(block_size):
            padded = jnp.maximum(padded, m2[:, :, s:s + H, t:t + W])
    block_mask = 1.0 - padded
    count_m = float(B * C * H * W)
    count_ones = jnp.sum(block_mask)
    return block_mask * x * (count_m / count_ones)


if __name__ == "__main__":
    key = jax.random.PRNGKey(0)
    kx, km = jax.random.split(key)

    B, C, H, W = 2, 4, 16, 16
    block_size = 3
    gamma = 0.1

    x = jax.random.normal(kx, (B, C, H, W), dtype=jnp.float32)

    out = dropblock(x, gamma, block_size=block_size, key=km, training=True)
    out = jax.block_until_ready(out)

    hm, wm = H - (block_size - 1), W - (block_size - 1)
    seed_mask = jax.random.bernoulli(km, gamma, (B, C, hm, wm))
    ref = _dropblock_reference(x, seed_mask, block_size)

    assert out.shape == x.shape and out.dtype == x.dtype
    assert jnp.allclose(out, ref, atol=1e-5, rtol=1e-5), "mismatch vs reference"

    print("KERNEL_OK")
</pallas_src>

<mosaic_0001>
module attributes {stable_mosaic.version = 11 : i64} {
  func.func @_dilate_kernel(%arg0: i32, %arg1: memref<8x18x18xi8, #tpu.memory_space<vmem>>, %arg2: memref<8x16x16xi8, #tpu.memory_space<vmem>>) attributes {dimension_semantics = [#tpu.dimension_semantics<parallel>], iteration_bounds = array<i64: 1>, scalar_prefetch = 0 : i64, scratch_operands = 0 : i64, tpu.core_type = #tpu.core_type<tc>, window_params = [{transform_indices = @transform_0, window_bounds = array<i64: 8, 18, 18>}, {transform_indices = @transform_1, window_bounds = array<i64: 8, 16, 16>}]} {
    %c0 = arith.constant 0 : index
    %c0_0 = arith.constant 0 : index
    %c0_1 = arith.constant 0 : index
    %0 = vector.load %arg1[%c0, %c0_0, %c0_1] : memref<8x18x18xi8, #tpu.memory_space<vmem>>, vector<8x18x18xi8>
    %1 = arith.sitofp %0 : vector<8x18x18xi8> to vector<8x18x18xf32>
    %2 = vector.extract_strided_slice %1 {offsets = [0, 0, 0], sizes = [8, 18, 16], strides = [1, 1, 1]} : vector<8x18x18xf32> to vector<8x18x16xf32>
    %3 = vector.extract_strided_slice %1 {offsets = [0, 0, 1], sizes = [8, 18, 16], strides = [1, 1, 1]} : vector<8x18x18xf32> to vector<8x18x16xf32>
    %4 = arith.maximumf %2, %3 : vector<8x18x16xf32>
    %5 = vector.extract_strided_slice %1 {offsets = [0, 0, 2], sizes = [8, 18, 16], strides = [1, 1, 1]} : vector<8x18x18xf32> to vector<8x18x16xf32>
    %6 = arith.maximumf %4, %5 : vector<8x18x16xf32>
    %7 = vector.extract_strided_slice %6 {offsets = [0, 0, 0], sizes = [8, 16, 16], strides = [1, 1, 1]} : vector<8x18x16xf32> to vector<8x16x16xf32>
    %8 = vector.extract_strided_slice %6 {offsets = [0, 1, 0], sizes = [8, 16, 16], strides = [1, 1, 1]} : vector<8x18x16xf32> to vector<8x16x16xf32>
    %9 = arith.maximumf %7, %8 : vector<8x16x16xf32>
    %10 = vector.extract_strided_slice %6 {offsets = [0, 2, 0], sizes = [8, 16, 16], strides = [1, 1, 1]} : vector<8x18x16xf32> to vector<8x16x16xf32>
    %11 = arith.maximumf %9, %10 : vector<8x16x16xf32>
    %cst = arith.constant 0.000000e+00 : f32
    %12 = vector.broadcast %cst : f32 to vector<8x16x16xf32>
    %13 = arith.cmpf oeq, %11, %12 : vector<8x16x16xf32>
    %14 = arith.extui %13 : vector<8x16x16xi1> to vector<8x16x16xi8>
    %c0_2 = arith.constant 0 : index
    %c0_3 = arith.constant 0 : index
    %c0_4 = arith.constant 0 : index
    %15 = vector.load %arg2[%c0_2, %c0_3, %c0_4] : memref<8x16x16xi8, #tpu.memory_space<vmem>>, vector<8x16x16xi8>
    tpu.vector_store %arg2[%c0_2, %c0_3, %c0_4], %14 {strides = array<i32>} : memref<8x16x16xi8, #tpu.memory_space<vmem>>, vector<8x16x16xi8>,
    return
  }
  func.func @transform_0(%arg0: i32) -> (i32, i32, i32) {
    %c0_i32 = arith.constant 0 : i32
    %c0_i32_0 = arith.constant 0 : i32
    %c0_i32_1 = arith.constant 0 : i32
    return %arg0, %c0_i32, %c0_i32_0 : i32, i32, i32
  }
  func.func @transform_1(%arg0: i32) -> (i32, i32, i32) {
    %c0_i32 = arith.constant 0 : i32
    %c0_i32_0 = arith.constant 0 : i32
    %c0_i32_1 = arith.constant 0 : i32
    return %arg0, %c0_i32, %c0_i32_0 : i32, i32, i32
  }
}

</mosaic_0001>

<llo_original>
// kernel: tpu_custom_call.1
$region0: #{tpu_custom_call.1}
  #allocation0 [shape = 'u32[]', space=smem, size = 0x4, offset = 0x4, fixed_abs, tag = 'smem constant byte address 0x4 - core index']
  #allocation1 [shape = 'u32[144,128]{1,0:T(1,128)}', space=vmem, size = 0x12000, scoped, tag = 'internal scratch']
  %s0 = inlined_call_operand.vmem [shape: s8[8,18,18], index: 0, kind: input, shape index: {}]
  %s1 = inlined_call_operand.hbm [shape: s8[8,16,16], index: 1, kind: output, shape index: {}]
  %s2 = sld [smem:[#allocation0]]
  $region14: #{tpu_custom_call.1} parent=0
    _
  %s4 = ssub.s32 1, %s2
  %s5 = scalar_select 0, %s4, %s2
  $region1: #{tpu_custom_call.1} parent=0
    #allocation2 [shape = 'u8[16384]{0}', space=vmem, size = 0x4000, scoped, tag = 'output window, operand 0, single buffered']
    #allocation3 [shape = 's32[1]{0}', space=sflag, size = 0x4, scoped, tag = 'scoped memory for tpu_custom_call.1']
    %6 = vsyncpa [#allocation3], 0
    // Predicated region
    $region2: #{tpu_custom_call.1} parent=1 // pred_check
      _
    $region3: #{tpu_custom_call.1} parent=1 // pred_check_branch
      %8 = sbr.rel (0) target = $region5
    $region4: #{tpu_custom_call.1} parent=1 // pred_region
      _
    $region5: #{tpu_custom_call.1} parent=1 // pred_fallthru
      _
    %v11 = vld [vmem:[%s0] sm:$0x3]
    %v12 = vld [vmem:[%s0 + $0x2] sm:$0x3]
    %v13 = vld [vmem:[%s0 + $0x4] sm:$0x1]
    %v14 = vld [vmem:[%s0 + $0x6] sm:$0x3]
    %v15 = vld [vmem:[%s0 + $0x8] sm:$0x3]
    %v16 = vld [vmem:[%s0 + $0xa] sm:$0x1]
    %v17 = vld [vmem:[%s0 + $0xc] sm:$0x3]
    %v18 = vld [vmem:[%s0 + $0xe] sm:$0x3]
    %v19 = vld [vmem:[%s0 + $0x10] sm:$0x1]
    %v20 = vld [vmem:[%s0 + $0x12] sm:$0x3]
    %v21 = vld [vmem:[%s0 + $0x14] sm:$0x3]
    %v22 = vld [vmem:[%s0 + $0x16] sm:$0x1]
    %v23 = vld [vmem:[%s0 + $0x18] sm:$0x3]
    %v24 = vld [vmem:[%s0 + $0x1a] sm:$0x3]
    %v25 = vld [vmem:[%s0 + $0x1c] sm:$0x1]
    %v26 = vld [vmem:[%s0 + $0x1e] sm:$0x3]
    %v27 = vld [vmem:[%s0 + $0x20] sm:$0x3]
    %v28 = vld [vmem:[%s0 + $0x22] sm:$0x1]
    %v29 = vld [vmem:[%s0 + $0x24] sm:$0x3]
    %v30 = vld [vmem:[%s0 + $0x26] sm:$0x3]
    %v31 = vld [vmem:[%s0 + $0x28] sm:$0x1]
    %v32 = vld [vmem:[%s0 + $0x2a] sm:$0x3]
    %v33 = vld [vmem:[%s0 + $0x2c] sm:$0x3]
    %v34 = vld [vmem:[%s0 + $0x2e] sm:$0x1]
    %v35 = vunpack.c.0.s8 %v11
    %v36 = vunpack.c.0.s8 %v12
    %v37 = vunpack.c.0.s8 %v13
    %v38 = vunpack.c.0.s8 %v14
    %v39 = vunpack.c.0.s8 %v15
    %v40 = vunpack.c.0.s8 %v16
    %v41 = vunpack.c.0.s8 %v17
    %v42 = vunpack.c.0.s8 %v18
    %v43 = vunpack.c.0.s8 %v19
    %v44 = vunpack.c.0.s8 %v20
    %v45 = vunpack.c.0.s8 %v21
    %v46 = vunpack.c.0.s8 %v22
    %v47 = vunpack.c.0.s8 %v23
    %v48 = vunpack.c.0.s8 %v24
    %v49 = vunpack.c.0.s8 %v25
    %v50 = vunpack.c.0.s8 %v26
    %v51 = vunpack.c.0.s8 %v27
    %v52 = vunpack.c.0.s8 %v28
    %v53 = vunpack.c.0.s8 %v29
    %v54 = vunpack.c.0.s8 %v30
    %v55 = vunpack.c.0.s8 %v31
    %v56 = vunpack.c.0.s8 %v32
    %v57 = vunpack.c.0.s8 %v33
    %v58 = vunpack.c.0.s8 %v34
    %v59 = vcvt.s32.f32 %v35
    %v60 = vcvt.s32.f32 %v36
    %v61 = vcvt.s32.f32 %v37
    %v62 = vcvt.s32.f32 %v38
    %v63 = vcvt.s32.f32 %v39
    %v64 = vcvt.s32.f32 %v40
    %v65 = vcvt.s32.f32 %v41
    %v66 = vcvt.s32.f32 %v42
    %v67 = vcvt.s32.f32 %v43
    %v68 = vcvt.s32.f32 %v44
    %v69 = vcvt.s32.f32 %v45
    %v70 = vcvt.s32.f32 %v46
    %v71 = vcvt.s32.f32 %v47
    %v72 = vcvt.s32.f32 %v48
    %v73 = vcvt.s32.f32 %v49
    %v74 = vcvt.s32.f32 %v50
    %v75 = vcvt.s32.f32 %v51
    %v76 = vcvt.s32.f32 %v52
    %v77 = vcvt.s32.f32 %v53
    %v78 = vcvt.s32.f32 %v54
    %v79 = vcvt.s32.f32 %v55
    %v80 = vcvt.s32.f32 %v56
    %v81 = vcvt.s32.f32 %v57
    %v82 = vcvt.s32.f32 %v58
    %107 = vrot.lane.b32.xlu0 %v59, 127
    %v108 = vpop.permute.xlu0 %107
    %109 = vrot.lane.b32.xlu0 %v60, 127
    %v110 = vpop.permute.xlu0 %109
    %111 = vrot.lane.b32.xlu0 %v61, 127
    %v112 = vpop.permute.xlu0 %111
    %113 = vrot.lane.b32.xlu0 %v62, 127
    %v114 = vpop.permute.xlu0 %113
    %115 = vrot.lane.b32.xlu0 %v63, 127
    %v116 = vpop.permute.xlu0 %115
    %117 = vrot.lane.b32.xlu0 %v64, 127
    %v118 = vpop.permute.xlu0 %117
    %119 = vrot.lane.b32.xlu0 %v65, 127
    %v120 = vpop.permute.xlu0 %119
    %121 = vrot.lane.b32.xlu0 %v66, 127
    %v122 = vpop.permute.xlu0 %121
    %123 = vrot.lane.b32.xlu0 %v67, 127
    %v124 = vpop.permute.xlu0 %123
    %125 = vrot.lane.b32.xlu0 %v68, 127
    %v126 = vpop.permute.xlu0 %125
    %127 = vrot.lane.b32.xlu0 %v69, 127
    %v128 = vpop.permute.xlu0 %127
    %129 = vrot.lane.b32.xlu0 %v70, 127
    %v130 = vpop.permute.xlu0 %129
    %131 = vrot.lane.b32.xlu0 %v71, 127
    %v132 = vpop.permute.xlu0 %131
    %133 = vrot.lane.b32.xlu0 %v72, 127
    %v134 = vpop.permute.xlu0 %133
    %135 = vrot.lane.b32.xlu0 %v73, 127
    %v136 = vpop.permute.xlu0 %135
    %137 = vrot.lane.b32.xlu0 %v74, 127
    %v138 = vpop.permute.xlu0 %137
    %139 = vrot.lane.b32.xlu0 %v75, 127
    %v140 = vpop.permute.xlu0 %139
    %141 = vrot.lane.b32.xlu0 %v76, 127
    %v142 = vpop.permute.xlu0 %141
    %143 = vrot.lane.b32.xlu0 %v77, 127
    %v144 = vpop.permute.xlu0 %143
    %145 = vrot.lane.b32.xlu0 %v78, 127
    %v146 = vpop.permute.xlu0 %145
    %147 = vrot.lane.b32.xlu0 %v79, 127
    %v148 = vpop.permute.xlu0 %147
    %149 = vrot.lane.b32.xlu0 %v80, 127
    %v150 = vpop.permute.xlu0 %149
    %151 = vrot.lane.b32.xlu0 %v81, 127
    %v152 = vpop.permute.xlu0 %151
    %153 = vrot.lane.b32.xlu0 %v82, 127
    %v154 = vpop.permute.xlu0 %153
    %v179 = vmax.f32 %v59, %v108
    %v180 = vmax.f32 %v60, %v110
    %v181 = vmax.f32 %v61, %v112
    %v182 = vmax.f32 %v62, %v114
    %v183 = vmax.f32 %v63, %v116
    %v184 = vmax.f32 %v64, %v118
    %v185 = vmax.f32 %v65, %v120
    %v186 = vmax.f32 %v66, %v122
    %v187 = vmax.f32 %v67, %v124
    %v188 = vmax.f32 %v68, %v126
    %v189 = vmax.f32 %v69, %v128
    %v190 = vmax.f32 %v70, %v130
    %v191 = vmax.f32 %v71, %v132
    %v192 = vmax.f32 %v72, %v134
    %v193 = vmax.f32 %v73, %v136
    %v194 = vmax.f32 %v74, %v138
    %v195 = vmax.f32 %v75, %v140
    %v196 = vmax.f32 %v76, %v142
    %v197 = vmax.f32 %v77, %v144
    %v198 = vmax.f32 %v78, %v146
    %v199 = vmax.f32 %v79, %v148
    %v200 = vmax.f32 %v80, %v150
    %v201 = vmax.f32 %v81, %v152
    %v202 = vmax.f32 %v82, %v154
    %203 = vrot.lane.b32.xlu0 %v59, 126
    %v204 = vpop.permute.xlu0 %203
    %205 = vrot.lane.b32.xlu0 %v60, 126
    %v206 = vpop.permute.xlu0 %205
    %207 = vrot.lane.b32.xlu0 %v61, 126
    %v208 = vpop.permute.xlu0 %207
    %209 = vrot.lane.b32.xlu0 %v62, 126
    %v210 = vpop.permute.xlu0 %209
    %211 = vrot.lane.b32.xlu0 %v63, 126
    %v212 = vpop.permute.xlu0 %211
    %213 = vrot.lane.b32.xlu0 %v64, 126
    %v214 = vpop.permute.xlu0 %213
    %215 = vrot.lane.b32.xlu0 %v65, 126
    %v216 = vpop.permute.xlu0 %215
    %217 = vrot.lane.b32.xlu0 %v66, 126
    %v218 = vpop.permute.xlu0 %217
    %219 = vrot.lane.b32.xlu0 %v67, 126
    %v220 = vpop.permute.xlu0 %219
    %221 = vrot.lane.b32.xlu0 %v68, 126
    %v222 = vpop.permute.xlu0 %221
    %223 = vrot.lane.b32.xlu0 %v69, 126
    %v224 = vpop.permute.xlu0 %223
    %225 = vrot.lane.b32.xlu0 %v70, 126
    %v226 = vpop.permute.xlu0 %225
    %227 = vrot.lane.b32.xlu0 %v71, 126
    %v228 = vpop.permute.xlu0 %227
    %229 = vrot.lane.b32.xlu0 %v72, 126
    %v230 = vpop.permute.xlu0 %229
    %231 = vrot.lane.b32.xlu0 %v73, 126
    %v232 = vpop.permute.xlu0 %231
    %233 = vrot.lane.b32.xlu0 %v74, 126
    %v234 = vpop.permute.xlu0 %233
    %235 = vrot.lane.b32.xlu0 %v75, 126
    %v236 = vpop.permute.xlu0 %235
    %237 = vrot.lane.b32.xlu0 %v76, 126
    %v238 = vpop.permute.xlu0 %237
    %239 = vrot.lane.b32.xlu0 %v77, 126
    %v240 = vpop.permute.xlu0 %239
    %241 = vrot.lane.b32.xlu0 %v78, 126
    %v242 = vpop.permute.xlu0 %241
    %243 = vrot.lane.b32.xlu0 %v79, 126
    %v244 = vpop.permute.xlu0 %243
    %245 = vrot.lane.b32.xlu0 %v80, 126
    %v246 = vpop.permute.xlu0 %245
    %247 = vrot.lane.b32.xlu0 %v81, 126
    %v248 = vpop.permute.xlu0 %247
    %249 = vrot.lane.b32.xlu0 %v82, 126
    %v250 = vpop.permute.xlu0 %249
    %v275 = vmax.f32 %v179, %v204
    %v276 = vmax.f32 %v180, %v206
    %v277 = vmax.f32 %v181, %v208
    %v278 = vmax.f32 %v182, %v210
    %v279 = vmax.f32 %v183, %v212
    %v280 = vmax.f32 %v184, %v214
    %v281 = vmax.f32 %v185, %v216
    %v282 = vmax.f32 %v186, %v218
    %v283 = vmax.f32 %v187, %v220
    %v284 = vmax.f32 %v188, %v222
    %v285 = vmax.f32 %v189, %v224
    %v286 = vmax.f32 %v190, %v226
    %v287 = vmax.f32 %v191, %v228
    %v288 = vmax.f32 %v192, %v230
    %v289 = vmax.f32 %v193, %v232
    %v290 = vmax.f32 %v194, %v234
    %v291 = vmax.f32 %v195, %v236
    %v292 = vmax.f32 %v196, %v238
    %v293 = vmax.f32 %v197, %v240
    %v294 = vmax.f32 %v198, %v242
    %v295 = vmax.f32 %v199, %v244
    %v296 = vmax.f32 %v200, %v246
    %v297 = vmax.f32 %v201, %v248
    %v298 = vmax.f32 %v202, %v250
    %vm323 = vcmask 1046528
    %v324 = vrot.slane %v275, 1
    %v325 = vrot.slane %v276, 1
    %v326 = vsel %vm323, %v324, %v325
    %v327 = vrot.slane %v277, 1
    %v328 = vsel %vm323, %v325, %v327
    %v329 = vrot.slane %v278, 1
    %v330 = vrot.slane %v279, 1
    %v331 = vsel %vm323, %v329, %v330
    %v332 = vrot.slane %v280, 1
    %v333 = vsel %vm323, %v330, %v332
    %v334 = vrot.slane %v281, 1
    %v335 = vrot.slane %v282, 1
    %v336 = vsel %vm323, %v334, %v335
    %v337 = vrot.slane %v283, 1
    %v338 = vsel %vm323, %v335, %v337
    %v339 = vrot.slane %v284, 1
    %v340 = vrot.slane %v285, 1
    %v341 = vsel %vm323, %v339, %v340
    %v342 = vrot.slane %v286, 1
    %v343 = vsel %vm323, %v340, %v342
    %v344 = vrot.slane %v287, 1
    %v345 = vrot.slane %v288, 1
    %v346 = vsel %vm323, %v344, %v345
    %v347 = vrot.slane %v289, 1
    %v348 = vsel %vm323, %v345, %v347
    %v349 = vrot.slane %v290, 1
    %v350 = vrot.slane %v291, 1
    %v351 = vsel %vm323, %v349, %v350
    %v352 = vrot.slane %v292, 1
    %v353 = vsel %vm323, %v350, %v352
    %v354 = vrot.slane %v293, 1
    %v355 = vrot.slane %v294, 1
    %v356 = vsel %vm323, %v354, %v355
    %v357 = vrot.slane %v295, 1
    %v358 = vsel %vm323, %v355, %v357
    %v359 = vrot.slane %v296, 1
    %v360 = vrot.slane %v297, 1
    %v361 = vsel %vm323, %v359, %v360
    %v362 = vrot.slane %v298, 1
    %v363 = vsel %vm323, %v360, %v362
    %v380 = vmax.f32 %v275, %v326
    %v381 = vmax.f32 %v276, %v328
    %v382 = vmax.f32 %v278, %v331
    %v383 = vmax.f32 %v279, %v333
    %v384 = vmax.f32 %v281, %v336
    %v385 = vmax.f32 %v282, %v338
    %v386 = vmax.f32 %v284, %v341
    %v387 = vmax.f32 %v285, %v343
    %v388 = vmax.f32 %v287, %v346
    %v389 = vmax.f32 %v288, %v348
    %v390 = vmax.f32 %v290, %v351
    %v391 = vmax.f32 %v291, %v353
    %v392 = vmax.f32 %v293, %v356
    %v393 = vmax.f32 %v294, %v358
    %v394 = vmax.f32 %v296, %v361
    %v395 = vmax.f32 %v297, %v363
    %vm396 = vcmask 1045504
    %v397 = vrot.slane %v275, 2
    %v398 = vrot.slane %v276, 2
    %v399 = vsel %vm396, %v397, %v398
    %v400 = vrot.slane %v277, 2
    %v401 = vsel %vm396, %v398, %v400
    %v402 = vrot.slane %v278, 2
    %v403 = vrot.slane %v279, 2
    %v404 = vsel %vm396, %v402, %v403
    %v405 = vrot.slane %v280, 2
    %v406 = vsel %vm396, %v403, %v405
    %v407 = vrot.slane %v281, 2
    %v408 = vrot.slane %v282, 2
    %v409 = vsel %vm396, %v407, %v408
    %v410 = vrot.slane %v283, 2
    %v411 = vsel %vm396, %v408, %v410
    %v412 = vrot.slane %v284, 2
    %v413 = vrot.slane %v285, 2
    %v414 = vsel %vm396, %v412, %v413
    %v415 = vrot.slane %v286, 2
    %v416 = vsel %vm396, %v413, %v415
    %v417 = vrot.slane %v287, 2
    %v418 = vrot.slane %v288, 2
    %v419 = vsel %vm396, %v417, %v418
    %v420 = vrot.slane %v289, 2
    %v421 = vsel %vm396, %v418, %v420
    %v422 = vrot.slane %v290, 2
    %v423 = vrot.slane %v291, 2
    %v424 = vsel %vm396, %v422, %v423
    %v425 = vrot.slane %v292, 2
    %v426 = vsel %vm396, %v423, %v425
    %v427 = vrot.slane %v293, 2
    %v428 = vrot.slane %v294, 2
    %v429 = vsel %vm396, %v427, %v428
    %v430 = vrot.slane %v295, 2
    %v431 = vsel %vm396, %v428, %v430
    %v432 = vrot.slane %v296, 2
    %v433 = vrot.slane %v297, 2
    %v434 = vsel %vm396, %v432, %v433
    %v435 = vrot.slane %v298, 2
    %v436 = vsel %vm396, %v433, %v435
    %v453 = vmax.f32 %v380, %v399
    %v454 = vmax.f32 %v381, %v401
    %v455 = vmax.f32 %v382, %v404
    %v456 = vmax.f32 %v383, %v406
    %v457 = vmax.f32 %v384, %v409
    %v458 = vmax.f32 %v385, %v411
    %v459 = vmax.f32 %v386, %v414
    %v460 = vmax.f32 %v387, %v416
    %v461 = vmax.f32 %v388, %v419
    %v462 = vmax.f32 %v389, %v421
    %v463 = vmax.f32 %v390, %v424
    %v464 = vmax.f32 %v391, %v426
    %v465 = vmax.f32 %v392, %v429
    %v466 = vmax.f32 %v393, %v431
    %v467 = vmax.f32 %v394, %v434
    %v468 = vmax.f32 %v395, %v436
    %vm469 = vcmp.eq.f32.partialorder %v453, 0.0
    %vm470 = vcmp.eq.f32.partialorder %v454, 0.0
    %vm471 = vcmp.eq.f32.partialorder %v455, 0.0
    %vm472 = vcmp.eq.f32.partialorder %v456, 0.0
    %vm473 = vcmp.eq.f32.partialorder %v457, 0.0
    %vm474 = vcmp.eq.f32.partialorder %v458, 0.0
    %vm475 = vcmp.eq.f32.partialorder %v459, 0.0
    %vm476 = vcmp.eq.f32.partialorder %v460, 0.0
    %vm477 = vcmp.eq.f32.partialorder %v461, 0.0
    %vm478 = vcmp.eq.f32.partialorder %v462, 0.0
    %vm479 = vcmp.eq.f32.partialorder %v463, 0.0
    %vm480 = vcmp.eq.f32.partialorder %v464, 0.0
    %vm481 = vcmp.eq.f32.partialorder %v465, 0.0
    %vm482 = vcmp.eq.f32.partialorder %v466, 0.0
    %vm483 = vcmp.eq.f32.partialorder %v467, 0.0
    %vm484 = vcmp.eq.f32.partialorder %v468, 0.0
    %vm485 = vmpackc.low %vm470, %vm469
    %vm486 = vmpackc.even %vm485, %vm485
    %vm487 = vmpackc.low %vm472, %vm471
    %vm488 = vmpackc.even %vm487, %vm487
    %vm489 = vmpackc.low %vm474, %vm473
    %vm490 = vmpackc.even %vm489, %vm489
    %vm491 = vmpackc.low %vm476, %vm475
    %vm492 = vmpackc.even %vm491, %vm491
    %vm493 = vmpackc.low %vm478, %vm477
    %vm494 = vmpackc.even %vm493, %vm493
    %vm495 = vmpackc.low %vm480, %vm479
    %vm496 = vmpackc.even %vm495, %vm495
    %vm497 = vmpackc.low %vm482, %vm481
    %vm498 = vmpackc.even %vm497, %vm497
    %vm499 = vmpackc.low %vm484, %vm483
    %vm500 = vmpackc.even %vm499, %vm499
    %v501 = vsel %vm486, 16843009, 0
    %v502 = vsel %vm488, 16843009, 0
    %v503 = vsel %vm490, 16843009, 0
    %v504 = vsel %vm492, 16843009, 0
    %v505 = vsel %vm494, 16843009, 0
    %v506 = vsel %vm496, 16843009, 0
    %v507 = vsel %vm498, 16843009, 0
    %v508 = vsel %vm500, 16843009, 0
    %v509 = vunpack.c.0.s8 %v501
    %v510 = vunpack.c.1.s8 %v501
    %v511 = vunpack.c.0.s8 %v502
    %v512 = vunpack.c.1.s8 %v502
    %v513 = vunpack.c.0.s8 %v503
    %v514 = vunpack.c.1.s8 %v503
    %v515 = vunpack.c.0.s8 %v504
    %v516 = vunpack.c.1.s8 %v504
    %v517 = vunpack.c.0.s8 %v505
    %v518 = vunpack.c.1.s8 %v505
    %v519 = vunpack.c.0.s8 %v506
    %v520 = vunpack.c.1.s8 %v506
    %v521 = vunpack.c.0.s8 %v507
    %v522 = vunpack.c.1.s8 %v507
    %v523 = vunpack.c.0.s8 %v508
    %v524 = vunpack.c.1.s8 %v508
    %v525 = vpack.c.b16 %v509, %v509
    %v526 = vpack.c.b8 %v525, %v525
    %v527 = vpack.c.b16 %v510, %v510
    %v528 = vpack.c.b8 %v527, %v527
    %v529 = vpack.c.b16 %v511, %v511
    %v530 = vpack.c.b8 %v529, %v529
    %v531 = vpack.c.b16 %v512, %v512
    %v532 = vpack.c.b8 %v531, %v531
    %v533 = vpack.c.b16 %v513, %v513
    %v534 = vpack.c.b8 %v533, %v533
    %v535 = vpack.c.b16 %v514, %v514
    %v536 = vpack.c.b8 %v535, %v535
    %v537 = vpack.c.b16 %v515, %v515
    %v538 = vpack.c.b8 %v537, %v537
    %v539 = vpack.c.b16 %v516, %v516
    %v540 = vpack.c.b8 %v539, %v539
    %v541 = vpack.c.b16 %v517, %v517
    %v542 = vpack.c.b8 %v541, %v541
    %v543 = vpack.c.b16 %v518, %v518
    %v544 = vpack.c.b8 %v543, %v543
    %v545 = vpack.c.b16 %v519, %v519
    %v546 = vpack.c.b8 %v545, %v545
    %v547 = vpack.c.b16 %v520, %v520
    %v548 = vpack.c.b8 %v547, %v547
    %v549 = vpack.c.b16 %v521, %v521
    %v550 = vpack.c.b8 %v549, %v549
    %v551 = vpack.c.b16 %v522, %v522
    %v552 = vpack.c.b8 %v551, %v551
    %v553 = vpack.c.b16 %v523, %v523
    %v554 = vpack.c.b8 %v553, %v553
    %v555 = vpack.c.b16 %v524, %v524
    %v556 = vpack.c.b8 %v555, %v555
    %vm557 = vcmask 123904
    %558 = vst.msk [vmem:[#allocation2] sm:$0x3] %vm557, %v526
    %559 = vst.msk [vmem:[#allocation2 + $0x2] sm:$0x3] %vm557, %v528
    %560 = vst.msk [vmem:[#allocation2 + $0x4] sm:$0x3] %vm557, %v530
    %561 = vst.msk [vmem:[#allocation2 + $0x6] sm:$0x3] %vm557, %v532
    %562 = vst.msk [vmem:[#allocation2 + $0x8] sm:$0x3] %vm557, %v534
    %563 = vst.msk [vmem:[#allocation2 + $0xa] sm:$0x3] %vm557, %v536
    %564 = vst.msk [vmem:[#allocation2 + $0xc] sm:$0x3] %vm557, %v538
    %565 = vst.msk [vmem:[#allocation2 + $0xe] sm:$0x3] %vm557, %v540
    %566 = vst.msk [vmem:[#allocation2 + $0x10] sm:$0x3] %vm557, %v542
    %567 = vst.msk [vmem:[#allocation2 + $0x12] sm:$0x3] %vm557, %v544
    %568 = vst.msk [vmem:[#allocation2 + $0x14] sm:$0x3] %vm557, %v546
    %569 = vst.msk [vmem:[#allocation2 + $0x16] sm:$0x3] %vm557, %v548
    %570 = vst.msk [vmem:[#allocation2 + $0x18] sm:$0x3] %vm557, %v550
    %571 = vst.msk [vmem:[#allocation2 + $0x1a] sm:$0x3] %vm557, %v552
    %572 = vst.msk [vmem:[#allocation2 + $0x1c] sm:$0x3] %vm557, %v554
    %573 = vst.msk [vmem:[#allocation2 + $0x1e] sm:$0x3] %vm557, %v556
    // Predicated region
    $region6: #{tpu_custom_call.1} parent=1 // pred_check
      _
    $region7: #{tpu_custom_call.1} parent=1 // pred_check_branch
      %575 = sbr.rel (0) target = $region9
    $region8: #{tpu_custom_call.1} parent=1 // pred_region
      %s577 = ssub.s32 512, 512
      %578 = vsyncadd [#allocation3], %s577
      %s579 = sshll.u32 [#allocation2], 4
      %s580 = int_to_ptr.vmem [resolvable:$true] %s579
      %585 = dma.vmem_to_hbm [thread:$0]  %s580, 512, %s1, [#allocation3], 32, 32, 2
    $region9: #{tpu_custom_call.1} parent=1 // pred_fallthru
      _
    // Predicated region
    $region10: #{tpu_custom_call.1} parent=1 // pred_check
      _
    $region11: #{tpu_custom_call.1} parent=1 // pred_check_branch
      %587 = sbr.rel (0) target = $region13
    $region12: #{tpu_custom_call.1} parent=1 // pred_region
      %588 = dma.done [#allocation3], 512
    $region13: #{tpu_custom_call.1} parent=1 // pred_fallthru
      _
    %589 = vsyncpa [#allocation3], 1

</llo_original>
